<compile_context>
chip_gen: v7x
topology: tpu7x:2x2x1
jax: 0.10.0
libtpu: 0.0.40
codegen_flags: <defaults>
</compile_context>

<pallas_src>
import jax
import jax.numpy as jnp
from jax.experimental import pallas as pl
from jax.experimental.pallas import tpu as pltpu


# ---------------------------------------------------------------------------
# Kernel body (shared by both layouts: mean broadcasts over lanes OR sublanes)
# ---------------------------------------------------------------------------
def _make_gaussian_kernel(std: float):
    # Fold sign/scale into one trace-time constant: exp(d*d * (-1/(2 std^2)))
    neg_inv_two_std2 = -1.0 / (2.0 * float(std) ** 2)

    def gaussian_kernel(mean_ref, x_ref, o_ref):
        # mean_ref: (TR, 1) or (1, TC) tile; x_ref/o_ref: (TR, TC) tiles.
        x = x_ref[...].astype(jnp.float32)
        m = mean_ref[...].astype(jnp.float32)        # broadcasts across tile
        d = m - x
        o_ref[...] = jnp.exp((d * d) * neg_inv_two_std2).astype(o_ref.dtype)

    return gaussian_kernel


# ---------------------------------------------------------------------------
# Tile-size / VMEM policy
# ---------------------------------------------------------------------------
def _vmem_capacity_bytes() -> int:
    try:
        return int(pltpu.get_tpu_info().vmem_capacity_bytes)
    except Exception:
        return 64 * 1024 * 1024  # conservative: assume v7x-sized VMEM


def _round_up(n: int, m: int) -> int:
    return ((n + m - 1) // m) * m


def _pick_tiles(R: int, C: int):
    """Pick (TR, TC, vmem_limit_bytes) for an (R, C) problem (rows=sublanes)."""
    if _vmem_capacity_bytes() >= 100 * 1024 * 1024:
        # v5e / v6e: 128 MiB physical VMEM -> 16 MiB f32 tiles, ~66 MiB resident.
        max_r, max_c, vmem_limit = 2048, 2048, 96 * 1024 * 1024
    else:
        # v7x (64 MiB physical) or unknown: 8 MiB f32 tiles, ~33 MiB resident.
        max_r, max_c, vmem_limit = 1024, 2048, 48 * 1024 * 1024

    TR = R if R <= max_r else max_r          # full dim, or multiple of 8
    TC = C if C <= max_c else max_c          # full dim, or multiple of 128

    # Keep >= 2 grid blocks along a parallel axis so both v7x TensorCores work.
    if pl.cdiv(R, TR) * pl.cdiv(C, TC) < 2:
        if C >= 256:
            TC = _round_up(pl.cdiv(C, 2), 128)   # stays lane-dense (>=128)
        elif R >= 16:
            TR = _round_up(pl.cdiv(R, 2), 8)
    return TR, TC, vmem_limit


# ---------------------------------------------------------------------------
# pallas_call wrapper for one layout
# ---------------------------------------------------------------------------
def _run_gaussian(mean2d, x, std: float, out_dtype, mean_along_rows: bool):
    R, C = x.shape
    TR, TC, vmem_limit = _pick_tiles(R, C)
    grid = (pl.cdiv(R, TR), pl.cdiv(C, TC))

    if mean_along_rows:
        # mean2d: (R, 1) column, broadcast across lanes (batch axis).
        mean_spec = pl.BlockSpec((TR, 1), lambda i, j: (i, 0))
    else:
        # mean2d: (1, C) row, broadcast across sublanes (batch axis).
        mean_spec = pl.BlockSpec((1, TC), lambda i, j: (0, j))

    return pl.pallas_call(
        _make_gaussian_kernel(std),
        out_shape=jax.ShapeDtypeStruct((R, C), out_dtype),
        grid=grid,
        in_specs=[
            mean_spec,
            pl.BlockSpec((TR, TC), lambda i, j: (i, j)),
        ],
        out_specs=pl.BlockSpec((TR, TC), lambda i, j: (i, j)),
        compiler_params=pltpu.CompilerParams(
            dimension_semantics=("parallel", "parallel"),
            vmem_limit_bytes=vmem_limit,
        ),
    )(mean2d, x)


# ---------------------------------------------------------------------------
# Public forward: exp(-(mean[:,None] - x)^2 / (2 std^2)), x of shape (F, B)
# ---------------------------------------------------------------------------
def gaussian_forward(mean: jax.Array, x: jax.Array, std: float = 1.0,
                     out_dtype=None) -> jax.Array:
    """mean: (F,) parameter; x: (F, B); returns (F, B)."""
    F_, B = x.shape
    assert mean.shape == (F_,)
    if float(std) == 0.0:
        raise ValueError("std must be nonzero (matches PyTorch failure mode).")
    out_dtype = x.dtype if out_dtype is None else out_dtype

    # Keep mean in its native dtype; the kernel upcasts both operands to f32.
    if B < 128 and F_ >= 128:
        # Lane-dense small-batch path: compute in (B, F) layout so the kernel's
        # output last dim is F (>=128) -> unmasked vector stores. Wrapper-side
        # transpose is layout plumbing, not extra compute.
        out_t = _run_gaussian(mean.reshape(1, F_), x.T, std, out_dtype,
                              mean_along_rows=False)
        return out_t.T
    else:
        return _run_gaussian(mean.reshape(F_, 1), x, std, out_dtype,
                             mean_along_rows=True)


# ---------------------------------------------------------------------------
# Self-test
# ---------------------------------------------------------------------------
if __name__ == "__main__":
    std = 1.0

    def ref_gauss(mean, x):
        return jnp.exp(-((mean.astype(jnp.float32)[:, None]
                          - x.astype(jnp.float32)) ** 2) / (2.0 * std ** 2))

    # 1) Small deterministic example consistent with the module:
    #    F (feature dim of the `mean` parameter) = 32, batch_size = 8.
    F_, B = 32, 8
    k_mean, k_x = jax.random.split(jax.random.PRNGKey(0))
    mean = jax.random.normal(k_mean, (F_,), dtype=jnp.float32)   # the "Parameter"
    x = jax.random.normal(k_x, (F_, B), dtype=jnp.float32)       # input, layout (F, B)

    out = jax.block_until_ready(gaussian_forward(mean, x, std))
    assert out.shape == (F_, B)
    assert jnp.allclose(out, ref_gauss(mean, x), atol=1e-6, rtol=1e-6)

    # 2) Larger lane-dense shape (multi-block 2-D grid, column-mean path).
    F2, B2 = 2048, 1024
    k_m2, k_x2 = jax.random.split(jax.random.PRNGKey(1))
    mean2 = jax.random.normal(k_m2, (F2,), dtype=jnp.float32)
    x2 = jax.random.normal(k_x2, (F2, B2), dtype=jnp.float32)
    out2 = jax.block_until_ready(gaussian_forward(mean2, x2, std))
    assert jnp.allclose(out2, ref_gauss(mean2, x2), atol=1e-6, rtol=1e-6)

    # 3) Small-batch / large-feature shape -> exercises the lane-dense
    #    transposed (row-mean) path.
    F3, B3 = 2048, 64
    k_m3, k_x3 = jax.random.split(jax.random.PRNGKey(2))
    mean3 = jax.random.normal(k_m3, (F3,), dtype=jnp.float32)
    x3 = jax.random.normal(k_x3, (F3, B3), dtype=jnp.float32)
    out3 = jax.block_until_ready(gaussian_forward(mean3, x3, std))
    assert jnp.allclose(out3, ref_gauss(mean3, x3), atol=1e-6, rtol=1e-6)

    # 4) Mixed dtypes: bf16 input/output with f32 mean parameter (mean is NOT
    #    downcast; math is f32 in-kernel, output cast to bf16).
    x4 = x2.astype(jnp.bfloat16)
    out4 = jax.block_until_ready(
        gaussian_forward(mean2, x4, std, out_dtype=jnp.bfloat16))
    assert out4.dtype == jnp.bfloat16
    assert jnp.allclose(out4.astype(jnp.float32), ref_gauss(mean2, x4),
                        atol=1e-2, rtol=1e-2)

    print("KERNEL_OK")
</pallas_src>

<mosaic_0001>
module attributes {stable_mosaic.version = 11 : i64} {
  func.func @gaussian_kernel(%arg0: i32, %arg1: i32, %arg2: memref<16x1xf32, #tpu.memory_space<vmem>>, %arg3: memref<16x8xf32, #tpu.memory_space<vmem>>, %arg4: memref<16x8xf32, #tpu.memory_space<vmem>>) attributes {dimension_semantics = [#tpu.dimension_semantics<parallel>, #tpu.dimension_semantics<parallel>], iteration_bounds = array<i64: 2, 1>, scalar_prefetch = 0 : i64, scratch_operands = 0 : i64, tpu.core_type = #tpu.core_type<tc>, window_params = [{transform_indices = @transform_0, window_bounds = array<i64: 16, 1>}, {transform_indices = @transform_1, window_bounds = array<i64: 16, 8>}, {transform_indices = @transform_2, window_bounds = array<i64: 16, 8>}]} {
    %c0 = arith.constant 0 : index
    %c0_0 = arith.constant 0 : index
    %0 = vector.load %arg3[%c0, %c0_0] : memref<16x8xf32, #tpu.memory_space<vmem>>, vector<16x8xf32>
    %c0_1 = arith.constant 0 : index
    %c0_2 = arith.constant 0 : index
    %1 = vector.load %arg2[%c0_1, %c0_2] : memref<16x1xf32, #tpu.memory_space<vmem>>, vector<16x1xf32>
    %2 = vector.broadcast %1 : vector<16x1xf32> to vector<16x8xf32>
    %3 = arith.subf %2, %0 : vector<16x8xf32>
    %4 = arith.mulf %3, %3 : vector<16x8xf32>
    %cst = arith.constant -5.000000e-01 : f32
    %5 = vector.broadcast %cst : f32 to vector<16x8xf32>
    %6 = arith.mulf %4, %5 : vector<16x8xf32>
    %7 = math.exp %6 : vector<16x8xf32>
    %c0_3 = arith.constant 0 : index
    %c0_4 = arith.constant 0 : index
    %8 = vector.load %arg4[%c0_3, %c0_4] : memref<16x8xf32, #tpu.memory_space<vmem>>, vector<16x8xf32>
    tpu.vector_store %arg4[%c0_3, %c0_4], %7 {strides = array<i32>} : memref<16x8xf32, #tpu.memory_space<vmem>>, vector<16x8xf32>,
    return
  }
  func.func @transform_0(%arg0: i32, %arg1: i32) -> (i32, i32) {
    %c0_i32 = arith.constant 0 : i32
    %c0_i32_0 = arith.constant 0 : i32
    return %arg0, %c0_i32 : i32, i32
  }
  func.func @transform_1(%arg0: i32, %arg1: i32) -> (i32, i32) {
    %c0_i32 = arith.constant 0 : i32
    return %arg0, %arg1 : i32, i32
  }
  func.func @transform_2(%arg0: i32, %arg1: i32) -> (i32, i32) {
    %c0_i32 = arith.constant 0 : i32
    return %arg0, %arg1 : i32, i32
  }
}

</mosaic_0001>

<llo_original>
// kernel: tpu_custom_call.1
$region0: #{tpu_custom_call.1}
  #allocation0 [shape = 'u32[]', space=smem, size = 0x4, offset = 0x4, fixed_abs, tag = 'smem constant byte address 0x4 - core index']
  #allocation1 [shape = 'u32[144,128]{1,0:T(1,128)}', space=vmem, size = 0x12000, scoped, tag = 'internal scratch']
  %s0 = inlined_call_operand.vmem [shape: f32[32,1], index: 0, kind: input, shape index: {}]
  %s1 = inlined_call_operand.vmem [shape: f32[32,8], index: 1, kind: input, shape index: {}]
  %s2 = inlined_call_operand.vmem [shape: f32[32,8], index: 2, kind: output, shape index: {}]
  %s3 = sld [smem:[#allocation0]]
  $region41: #{tpu_custom_call.1} parent=0
    _
  %s5 = ssub.s32 1, %s3
  %s6 = scalar_select 0, %s5, %s3
  loop: start=0, step=1, limit=4
  $region2: #{tpu_custom_call.1} parent=0 // loop_pre_header
    _
  $region3: #{tpu_custom_call.1} parent=0 // loop_header
    %s8 = sphi 0, %s12
    %p9 = scmp.ge.s32.totalorder %s8, 4
    %s15 = sphi 0, %s27
    %s16 = sphi 0, %s23
    %s17 = sphi 0, %s15
    %s18 = sphi 0, %s16
    %s19 = sphi 0, %s17
    %s20 = sphi 0, %s18
    %s30 = sphi 0, %s32
    %s33 = sphi 0, %s30
    %s34 = sphi 0, %s33
    %s50 = sphi 0, %s34
    %s58 = sphi 0, %s60
    %s61 = sphi 0, %s58
    %s62 = sphi 0, %s61
    %s78 = sphi 0, %s62
    %s86 = sphi 0, %s88
    %s89 = sphi 0, %s86
    %s90 = sphi 0, %s89
    %s106 = sphi 0, %s90
  $region4: #{tpu_custom_call.1} parent=0 // loop_header_branch
    %11 = sbr.rel (%p9) target = $region8
  $region5: #{tpu_custom_call.1} parent=0 // loop_body
    %s13 = ssub.s32 %s8, 1
    %s14 = ssub.s32 %s8, 2
    %s21 = sadd.s32 1, %s16
    %p22 = scmp.ge.s32.totalorder %s21, 1
    %s23 = scalar_select %p22, 0, %s21
    %s24 = sadd.s32 1, %s15
    %s25 = scalar_select %p22, %s24, %s15
    %p26 = scmp.ge.s32.totalorder %s25, 2
    %s27 = scalar_select %p26, 0, %s25
    %s28 = ssub.s32 %s15, %s27
    %p29 = scmp.eq.s32.totalorder %s28, 0
    %s31 = sadd.s32 %s30, 1
    %s32 = scalar_select %p29, %s30, %s31
    %p35 = pneg %p29
    %p36 = scmp.eq.s32.totalorder %s8, 1
    %p37 = por %p35, %p36
    %p38 = scmp.ne.s32.totalorder %s30, %s33
    %p39 = scmp.eq.s32.totalorder %s8, 0
    %p40 = por %p38, %p39
    %p41 = scmp.ne.s32.totalorder %s30, %s33
    %p42 = scmp.eq.s32.totalorder %s13, 1
    %p43 = por %p41, %p42
    %p44 = scmp.ne.s32.totalorder %s33, %s34
    %p45 = scmp.eq.s32.totalorder %s13, 0
    %p46 = por %p44, %p45
    %p47 = scmp.ne.s32.totalorder %s33, %s34
    %p48 = scmp.eq.s32.totalorder %s14, 1
    %p49 = por %p47, %p48
    %p51 = scmp.ne.s32.totalorder %s34, %s50
    %p52 = scmp.eq.s32.totalorder %s14, 0
    %p53 = por %p51, %p52
    %s54 = ssub.s32 %s15, %s27
    %s55 = ssub.s32 %s16, %s23
    %s56 = sor.u32 %s54, %s55
    %p57 = scmp.eq.s32.totalorder %s56, 0
    %s59 = sadd.s32 %s58, 1
    %s60 = scalar_select %p57, %s58, %s59
    %p63 = pneg %p57
    %p64 = scmp.eq.s32.totalorder %s8, 1
    %p65 = por %p63, %p64
    %p66 = scmp.ne.s32.totalorder %s58, %s61
    %p67 = scmp.eq.s32.totalorder %s8, 0
    %p68 = por %p66, %p67
    %p69 = scmp.ne.s32.totalorder %s58, %s61
    %p70 = scmp.eq.s32.totalorder %s13, 1
    %p71 = por %p69, %p70
    %p72 = scmp.ne.s32.totalorder %s61, %s62
    %p73 = scmp.eq.s32.totalorder %s13, 0
    %p74 = por %p72, %p73
    %p75 = scmp.ne.s32.totalorder %s61, %s62
    %p76 = scmp.eq.s32.totalorder %s14, 1
    %p77 = por %p75, %p76
    %p79 = scmp.ne.s32.totalorder %s62, %s78
    %p80 = scmp.eq.s32.totalorder %s14, 0
    %p81 = por %p79, %p80
    %s82 = ssub.s32 %s15, %s27
    %s83 = ssub.s32 %s16, %s23
    %s84 = sor.u32 %s82, %s83
    %p85 = scmp.eq.s32.totalorder %s84, 0
    %s87 = sadd.s32 %s86, 1
    %s88 = scalar_select %p85, %s86, %s87
    %p91 = pneg %p85
    %p92 = scmp.eq.s32.totalorder %s8, 1
    %p93 = por %p91, %p92
    %p94 = scmp.ne.s32.totalorder %s86, %s89
    %p95 = scmp.eq.s32.totalorder %s8, 0
    %p96 = por %p94, %p95
    %p97 = scmp.ne.s32.totalorder %s86, %s89
    %p98 = scmp.eq.s32.totalorder %s13, 1
    %p99 = por %p97, %p98
    %p100 = scmp.ne.s32.totalorder %s89, %s90
    %p101 = scmp.eq.s32.totalorder %s13, 0
    %p102 = por %p100, %p101
    %p103 = scmp.ne.s32.totalorder %s89, %s90
    %p104 = scmp.eq.s32.totalorder %s14, 1
    %p105 = por %p103, %p104
    %p107 = scmp.ne.s32.totalorder %s90, %s106
    %p108 = scmp.eq.s32.totalorder %s14, 0
    %p109 = por %p107, %p108
    %p110 = scmp.le.s32.totalorder 1, %s8
    %p111 = scmp.lt.s32.totalorder %s8, 3
    %p112 = pnand %p110, %p111
    %p113 = pneg %p112
    // Predicated region
    $region9: #{tpu_custom_call.1} parent=5 // pred_check
      _
    $region10: #{tpu_custom_call.1} parent=5 // pred_check_branch
      %115 = sbr.rel (%p112) target = $region12
    $region11: #{tpu_custom_call.1} parent=5 // pred_region
      %s116 = ssub.s32 %s8, 1
    $region12: #{tpu_custom_call.1} parent=5 // pred_fallthru
      _
    %p117 = scmp.lt.s32.totalorder %s8, 2
    // Predicated region
    $region13: #{tpu_custom_call.1} parent=5 // pred_check
      %p118 = pneg %p117
    $region14: #{tpu_custom_call.1} parent=5 // pred_check_branch
      %120 = sbr.rel (%p118) target = $region16
    $region15: #{tpu_custom_call.1} parent=5 // pred_region
      // Predicated region
      $region17: #{tpu_custom_call.1} parent=15 // pred_check
        %p121 = pneg %p40
      $region18: #{tpu_custom_call.1} parent=15 // pred_check_branch
        %123 = sbr.rel (%p121) target = $region20
      $region19: #{tpu_custom_call.1} parent=15 // pred_region
        %s124 = smul.u32 2, %s15
        %p125 = scmp.lt.s32.totalorder %s124, 3
        %s126 = scalar_select %p125, %s124, 3
        %s127 = smul.addr %s126, 8
        %s128 = scalar_lea.vmem %s0, %s127
        %s129 = smul.u32 2, %s15
      $region20: #{tpu_custom_call.1} parent=15 // pred_fallthru
        _
      // Predicated region
      $region21: #{tpu_custom_call.1} parent=15 // pred_check
        %p130 = pneg %p68
      $region22: #{tpu_custom_call.1} parent=15 // pred_check_branch
        %132 = sbr.rel (%p130) target = $region24
      $region23: #{tpu_custom_call.1} parent=15 // pred_region
        %s133 = smul.u32 2, %s15
        %p134 = scmp.lt.s32.totalorder %s133, 3
        %s135 = scalar_select %p134, %s133, 3
        %p136 = scmp.lt.s32.totalorder %s16, 0
        %s137 = scalar_select %p136, %s16, 0
        %s138 = sadd.s32 %s137, %s135
        %s139 = smul.addr %s138, 8
        %s140 = scalar_lea.vmem %s1, %s139
        %s141 = smul.u32 2, %s15
      $region24: #{tpu_custom_call.1} parent=15 // pred_fallthru
        _
    $region16: #{tpu_custom_call.1} parent=5 // pred_fallthru
      _
    %p142 = scmp.le.s32.totalorder 1, %s8
    %p143 = scmp.lt.s32.totalorder %s8, 3
    %p144 = pnand %p142, %p143
    %p145 = pneg %p144
    // Predicated region
    $region25: #{tpu_custom_call.1} parent=5 // pred_check
      _
    $region26: #{tpu_custom_call.1} parent=5 // pred_check_branch
      %147 = sbr.rel (%p144) target = $region28
    $region27: #{tpu_custom_call.1} parent=5 // pred_region
      %s148 = ssub.s32 %s8, 1
      %s149 = smul.u32 2, %s17
      %p150 = scmp.lt.s32.totalorder %s149, 3
      %s151 = scalar_select %p150, %s149, 3
      %s152 = smul.addr %s151, 8
      %s153 = scalar_lea.vmem %s0, %s152
      %p154 = pneg %p46
      %p155 = pneg %p43
      %s156 = smul.u32 2, %s17
      %p157 = scmp.lt.s32.totalorder %s156, 3
      %s158 = scalar_select %p157, %s156, 3
      %p159 = scmp.lt.s32.totalorder %s18, 0
      %s160 = scalar_select %p159, %s18, 0
      %s161 = sadd.s32 %s160, %s158
      %s162 = smul.addr %s161, 8
      %s163 = scalar_lea.vmem %s1, %s162
      %p164 = pneg %p74
      %p165 = pneg %p71
      %p166 = pneg %p102
      %p167 = pneg %p99
      %s168 = smul.u32 2, %s17
      %p169 = scmp.lt.s32.totalorder %s168, 3
      %s170 = scalar_select %p169, %s168, 3
      %p171 = scmp.lt.s32.totalorder %s18, 0
      %s172 = scalar_select %p171, %s18, 0
      %s173 = sadd.s32 %s172, %s170
      %s174 = smul.addr %s173, 8
      %s175 = scalar_lea.vmem %s2, %s174
      %s176 = smul.u32 2, %s17
      %p177 = scmp.lt.s32.totalorder %s176, 3
      %s178 = scalar_select %p177, %s176, 3
      %s179 = smul.addr %s178, 8
      %s180 = scalar_lea.vmem %s0, %s179
      %s181 = smul.u32 2, %s17
      %s182 = smul.u32 2, %s17
      %p183 = scmp.lt.s32.totalorder %s182, 3
      %s184 = scalar_select %p183, %s182, 3
      %p185 = scmp.lt.s32.totalorder %s18, 0
      %s186 = scalar_select %p185, %s18, 0
      %s187 = sadd.s32 %s186, %s184
      %s188 = smul.addr %s187, 8
      %s189 = scalar_lea.vmem %s1, %s188
      %s190 = smul.u32 2, %s17
      %s191 = smul.u32 2, %s17
      %p192 = scmp.lt.s32.totalorder %s191, 3
      %s193 = scalar_select %p192, %s191, 3
      %p194 = scmp.lt.s32.totalorder %s18, 0
      %s195 = scalar_select %p194, %s18, 0
      %s196 = sadd.s32 %s195, %s193
      %s197 = smul.addr %s196, 8
      %s198 = scalar_lea.vmem %s2, %s197
      %s199 = smul.u32 2, %s17
      %v200 = vld [vmem:[%s189] sm:$0xff]
      %v201 = vld [vmem:[%s189 + $0x8] sm:$0xff]
      %v202 = vld [vmem:[%s180] sm:$0xff]
      %v203 = vld [vmem:[%s180 + $0x8] sm:$0xff]
      %205 = vset.pattern.permute.xlu0 0
      %206 = vperm.xlu0 %205, %v202
      %v207 = vpop.permute.xlu0 %206
      %210 = vset.pattern.permute.xlu0 0
      %211 = vperm.xlu0 %210, %v203
      %v212 = vpop.permute.xlu0 %211
      %v214 = vsub.f32 %v207, %v200
      %v215 = vsub.f32 %v212, %v201
      %v216 = vmul.f32 %v214, %v214
      %v217 = vmul.f32 %v215, %v215
      %v218 = vmul.f32 %v216, -0.5
      %v219 = vmul.f32 %v217, -0.5
      %v220 = vmul.f32 %v218, 1.442695
      %v221 = vpow.pop %v220
      %v222 = vmul.f32 %v219, 1.442695
      %v223 = vpow.pop %v222
      %vm224 = vcmask 64512
      %225 = vst.msk [vmem:[%s198] sm:$0xff] %vm224, %v221
      %226 = vst.msk [vmem:[%s198 + $0x8] sm:$0xff] %vm224, %v223
      %s227 = smul.u32 2, %s17
      %p228 = scmp.lt.s32.totalorder %s227, 3
      %s229 = scalar_select %p228, %s227, 3
      %p230 = scmp.lt.s32.totalorder %s18, 0
      %s231 = scalar_select %p230, %s18, 0
      %s232 = sadd.s32 %s231, %s229
      %s233 = smul.addr %s232, 8
      %s234 = scalar_lea.vmem %s2, %s233
      // Predicated region
      $region29: #{tpu_custom_call.1} parent=27 // pred_check
        %p235 = pneg %p99
      $region30: #{tpu_custom_call.1} parent=27 // pred_check_branch
        %237 = sbr.rel (%p235) target = $region32
      $region31: #{tpu_custom_call.1} parent=27 // pred_region
        %s238 = smul.u32 2, %s17
      $region32: #{tpu_custom_call.1} parent=27 // pred_fallthru
        _
    $region28: #{tpu_custom_call.1} parent=5 // pred_fallthru
      _
    %p239 = scmp.le.s32.totalorder 2, %s8
    // Predicated region
    $region33: #{tpu_custom_call.1} parent=5 // pred_check
      %p240 = pneg %p239
    $region34: #{tpu_custom_call.1} parent=5 // pred_check_branch
      %242 = sbr.rel (%p240) target = $region36
    $region35: #{tpu_custom_call.1} parent=5 // pred_region
      %s243 = ssub.s32 %s8, 2
      // Predicated region
      $region37: #{tpu_custom_call.1} parent=35 // pred_check
        %p244 = pneg %p105
      $region38: #{tpu_custom_call.1} parent=35 // pred_check_branch
        %246 = sbr.rel (%p244) target = $region40
      $region39: #{tpu_custom_call.1} parent=35 // pred_region
        %s247 = smul.u32 2, %s19
        %p248 = scmp.lt.s32.totalorder %s247, 3
        %s249 = scalar_select %p248, %s247, 3
        %p250 = scmp.lt.s32.totalorder %s20, 0
        %s251 = scalar_select %p250, %s20, 0
        %s252 = sadd.s32 %s251, %s249
        %s253 = smul.addr %s252, 8
        %s254 = scalar_lea.vmem %s2, %s253
      $region40: #{tpu_custom_call.1} parent=35 // pred_fallthru
        _
    $region36: #{tpu_custom_call.1} parent=5 // pred_fallthru
      _
  $region6: #{tpu_custom_call.1} parent=0 // loop_footer
    %s12 = sadd.s32 1, %s8
  $region7: #{tpu_custom_call.1} parent=0 // loop_footer_branch
    %7 = sbr.rel target = $region3
  $region8: #{tpu_custom_call.1} parent=0 // loop_exit
    _

</llo_original>
